<compile_context>
chip_gen: v6e
topology: v6e:2x2x1
jax: 0.10.0
libtpu: 0.0.40
codegen_flags: <defaults>
</compile_context>

<pallas_src>
import functools

import jax
import jax.numpy as jnp
from jax import lax
from jax.experimental import pallas as pl
from jax.experimental.pallas import tpu as pltpu

_SOFTMAX_MASKING_CONSTANT = -99999.0


# --------------------------------------------------------------------------------------
# generation-aware tiling / VMEM budget
# --------------------------------------------------------------------------------------
def _tpu_vmem_capacity_bytes():
    try:
        info = pltpu.get_tpu_info()
        for name in ("vmem_capacity_bytes", "vmem_size_bytes", "vmem_bytes"):
            v = getattr(info, name, None)
            if v:
                return int(v)
    except Exception:
        pass
    return 64 * 1024 * 1024  # conservative fallback (v7x per-TC VMEM)


_VMEM_CAP = _tpu_vmem_capacity_bytes()
_BIG_VMEM = _VMEM_CAP >= 100 * 1024 * 1024            # v5e / v6e: 128 MiB
_VMEM_LIMIT = (96 if _BIG_VMEM else 48) * 1024 * 1024  # stay well under physical VMEM
_TL_TARGET = 16384 if _BIG_VMEM else 8192              # pixel-axis tile target
_TK_TARGET = 512 if _BIG_VMEM else 256                 # insdis column-slab target

# batch axis parallel (megacore), tiled reduction axis arbitrary.
# TODO(synk): for B=1 on v7x the second TensorCore idles; splitting the reduction axis
# into an extra parallel factor is not implemented.
_PARAMS_2D = pltpu.CompilerParams(
    dimension_semantics=("parallel", "arbitrary"),
    vmem_limit_bytes=_VMEM_LIMIT)


# --------------------------------------------------------------------------------------
# plain-JAX helpers (glue)
# --------------------------------------------------------------------------------------
def divide_no_nan(x, y):
    return jnp.nan_to_num(x / y, nan=0.0, posinf=0.0, neginf=0.0)


def _gumbel_topk_sample(logits, k, key):
    """Samples k points with the Gumbel-top-k trick (data-dependent -> JAX glue)."""
    u = jax.random.uniform(key, logits.shape, dtype=logits.dtype)
    g = -jnp.log(-jnp.log(u))
    _, idx = lax.top_k(logits + g, k)
    return idx


def _pad_lanes(x, value=0):
    """Pad the last axis up to a multiple of 128."""
    pad = (-x.shape[-1]) % 128
    if pad == 0:
        return x
    widths = [(0, 0)] * (x.ndim - 1) + [(0, pad)]
    return jnp.pad(x, widths, constant_values=value)


def _choose_tile(n, target):
    """Largest lane-dense tile (multiple of 128) <= target that divides n (n % 128 == 0)."""
    target = max(128, (target // 128) * 128)
    if n <= target:
        return n
    t = target
    while n % t != 0:
        t -= 128
    return t


def _mask_tile_target(n_queries):
    """VMEM-aware pixel-axis tile target for the (N, TL) mask / IoU kernels."""
    budget = int(_VMEM_LIMIT * 0.55)
    # ~3 f32 (N, TL) temporaries + double-buffered bf16 src/tgt blocks + masks
    per_col = max(n_queries, 8) * (3 * 4 + 2 * 2 * 2) + 16
    t = (budget // per_col // 128) * 128
    return max(128, min(_TL_TARGET, t))


# --------------------------------------------------------------------------------------
# in-kernel helpers
# --------------------------------------------------------------------------------------
def _lane_group_sum(x):
    """(..., T) with T % 128 == 0 -> (..., 128): VPU adds over 128-lane groups only."""
    t = x.shape[-1]
    acc = x[..., 0:128]
    for off in range(128, t, 128):
        acc = acc + x[..., off:off + 128]
    return acc


# --------------------------------------------------------------------------------------
# Pallas kernels
# --------------------------------------------------------------------------------------
def _focal_ce_kernel(pred_ref, gt_ref, w_ref, out_ref, *, alpha):
    # Whole-batch single block: pred (B, N, C), gt (B, N) i32, w (B, N) f32.
    # TODO(synk): focal_loss_gamma != 0 path not implemented (module calls with default 0.0).
    # TODO(synk): class axis sits on lanes (not 128-aligned); transpose to (B, C, N) if this
    # tiny kernel ever shows up in profiles.
    logits = pred_ref[...].astype(jnp.float32)                     # (B, N, C)
    labels = gt_ref[...]                                           # (B, N)
    w = w_ref[...].astype(jnp.float32)                             # (B, N)
    B, N, C = logits.shape
    m = jnp.max(logits, axis=-1, keepdims=True)
    lse = m + jnp.log(jnp.sum(jnp.exp(logits - m), axis=-1, keepdims=True))
    logp = logits - lse                                            # (B, N, C)
    iota_c = lax.broadcasted_iota(jnp.int32, (B, N, C), 2)
    onehot = (iota_c == labels[:, :, None]).astype(jnp.float32)
    loss = -jnp.sum(onehot * logp, axis=-1)                        # (B, N)
    is_bg = (labels == (C - 1)).astype(jnp.float32)                # background = last channel
    alpha_w = alpha * (1.0 - is_bg) + (1.0 - alpha) * is_bg
    fl = alpha_w * loss * w                                        # (B, N)
    s = jnp.sum(fl, axis=-1, keepdims=True)                        # (B, 1)
    c = jnp.sum((fl != 0.0).astype(jnp.float32), axis=-1, keepdims=True)
    per = s / jnp.maximum(c, 1.0)                                  # (B, 1)
    mean_loss = jnp.sum(per, axis=0, keepdims=True) * (1.0 / B)    # (1, 1)
    lane = lax.broadcasted_iota(jnp.int32, (1, 128), 1)
    out_ref[...] = jnp.where(lane == 0, mean_loss, 0.0)


def _mask_loss_kernel(src_ref, tgt_ref, msk_ref, cls_ref, out_ref,
                      ce_sum, ce_cnt, inter_acc, psum_acc, tsum_acc):
    # src/tgt: (1, N, TL) bf16   msk: (1, 2, TL) bf16 (row0 = ce-void, row1 = dice-drop)
    # cls: (1, N, 1) f32         out: (1, 1, 128)
    l = pl.program_id(1)

    @pl.when(l == 0)
    def _():
        ce_sum[...] = jnp.zeros_like(ce_sum)
        ce_cnt[...] = jnp.zeros_like(ce_cnt)
        inter_acc[...] = jnp.zeros_like(inter_acc)
        psum_acc[...] = jnp.zeros_like(psum_acc)
        tsum_acc[...] = jnp.zeros_like(tsum_acc)

    src = src_ref[0].astype(jnp.float32)                           # (N, TL)
    tgt = tgt_ref[0].astype(jnp.float32)                           # (N, TL)
    msk = msk_ref[0].astype(jnp.float32)                           # (2, TL)
    ce_void = msk[0:1]                                             # (1, TL)
    dice_drop = msk[1:2]                                           # (1, TL)
    n_queries = src.shape[0]

    # softmax / log-softmax over the query axis (axis 0) per pixel
    m = jnp.max(src, axis=0, keepdims=True)
    e = jnp.exp(src - m)
    s = jnp.sum(e, axis=0, keepdims=True)
    p = e * pl.reciprocal(s, approx=True)                          # EUP recip + VPU mul
    logp = (src - m) - jnp.log(s)

    # softmax cross-entropy per pixel, void (and padded) pixels zeroed
    ce = -jnp.sum(tgt * logp, axis=0, keepdims=True)               # (1, TL)
    ce = jnp.where(ce_void > 0.5, 0.0, ce)
    ce_sum[...] += _lane_group_sum(ce)                             # (1, 128) VPU adds
    ce_cnt[...] += _lane_group_sum((ce != 0.0).astype(jnp.float32))

    # dice partials (per query); dropped pixels excluded from the prediction mass
    p = jnp.where(dice_drop > 0.5, 0.0, p)
    inter_acc[...] += _lane_group_sum(p * tgt)                     # (N, 128)
    psum_acc[...] += _lane_group_sum(p)
    tsum_acc[...] += _lane_group_sum(tgt)

    @pl.when(l == pl.num_programs(1) - 1)
    def _():
        clsw = cls_ref[0].astype(jnp.float32)                      # (N, 1)
        inter = jnp.sum(inter_acc[...], axis=-1, keepdims=True)    # single XLU reduce
        psum = jnp.sum(psum_acc[...], axis=-1, keepdims=True)
        tsum = jnp.sum(tsum_acc[...], axis=-1, keepdims=True)
        num = 2.0 * inter + 1.0
        den = psum + tsum + 1.0                                    # >= 1, never zero
        ratio = num * pl.reciprocal(den, approx=True)
        dice = jnp.sum((1.0 - ratio) * clsw, axis=0, keepdims=True) * (0.75 / n_queries)
        ce_s = jnp.sum(ce_sum[...], axis=-1, keepdims=True)
        ce_c = jnp.sum(ce_cnt[...], axis=-1, keepdims=True)
        lane = lax.broadcasted_iota(jnp.int32, (1, 1, 128), 2)
        out_ref[...] = jnp.where(lane == 0, ce_s.reshape(1, 1, 1),
                       jnp.where(lane == 1, ce_c.reshape(1, 1, 1),
                       jnp.where(lane == 2, dice.reshape(1, 1, 1), 0.0)))


def _iou_kernel(src_ref, msk_ref, out_ref, inter_acc, denom_acc):
    # Fused replacement for process_gt's softmax(pred_masks) + 'bnl,bl->bn' einsum:
    # never materializes the softmax in HBM.
    # src: (1, N, TL) bf16   msk: (1, 2, TL) (row0 = void&valid, row1 = valid)   out: (1, N, 128)
    l = pl.program_id(1)

    @pl.when(l == 0)
    def _():
        inter_acc[...] = jnp.zeros_like(inter_acc)
        denom_acc[...] = jnp.zeros_like(denom_acc)

    src = src_ref[0].astype(jnp.float32)                           # (N, TL)
    msk = msk_ref[0].astype(jnp.float32)                           # (2, TL)
    void = msk[0:1]
    valid = msk[1:2]
    m = jnp.max(src, axis=0, keepdims=True)
    e = jnp.exp(src - m)
    s = jnp.sum(e, axis=0, keepdims=True)
    p = e * pl.reciprocal(s, approx=True)                          # (N, TL)
    inter_acc[...] += _lane_group_sum(p * void)
    denom_acc[...] += _lane_group_sum(p * valid)

    @pl.when(l == pl.num_programs(1) - 1)
    def _():
        i3 = jnp.sum(inter_acc[...], axis=-1, keepdims=True)[None]   # (1, N, 1)
        d3 = jnp.sum(denom_acc[...], axis=-1, keepdims=True)[None]
        lane = lax.broadcasted_iota(jnp.int32, out_ref.shape, 2)
        out_ref[...] = jnp.where(lane == 0, i3, jnp.where(lane == 1, d3, 0.0))


def _insdis_kernel(gt_ref, pr_ref, out_ref, sum_acc, cnt_acc, *, tk, k_valid):
    # gt: (1, N, K) bf16 resident   pr: (1, C, K) bf16 resident (pre-scaled by sqrt(1/T))
    # column slabs are sliced in-VMEM (no duplicate DMA).   out: (1, 1, 128)
    j = pl.program_id(1)

    @pl.when(j == 0)
    def _():
        sum_acc[...] = jnp.zeros_like(sum_acc)
        cnt_acc[...] = jnp.zeros_like(cnt_acc)

    gt = gt_ref[0]                                                 # (N, K) bf16
    pr = pr_ref[0]                                                 # (C, K) bf16
    start = pl.multiple_of(j * tk, 128)
    gtc = gt_ref[0, :, pl.ds(start, tk)]                           # (N, tk) in-VMEM slice
    prc = pr_ref[0, :, pl.ds(start, tk)]                           # (C, tk)
    dn = (((0,), (0,)), ((), ()))
    gt_sim = lax.dot_general(gt, gtc, dn, preferred_element_type=jnp.float32)    # (K, tk)
    pred_sim = lax.dot_general(pr, prc, dn, preferred_element_type=jnp.float32)  # (K, tk)
    K = gt.shape[1]
    if k_valid != K:
        # padded similarity rows must not leak into the logsumexp
        row = lax.broadcasted_iota(jnp.int32, pred_sim.shape, 0)
        pred_sim = jnp.where(row < k_valid, pred_sim, -1e9)

    norm = jnp.sum(gt_sim, axis=0, keepdims=True)                  # (1, tk)
    inv = pl.reciprocal(jnp.maximum(norm, 1.0), approx=True)
    m = jnp.max(pred_sim, axis=0, keepdims=True)
    lse = m + jnp.log(jnp.sum(jnp.exp(pred_sim - m), axis=0, keepdims=True))
    cross = jnp.sum(gt_sim * pred_sim, axis=0, keepdims=True)      # (1, tk)
    # -sum_k (gt_sim*inv) * (pred_sim - lse)  ==  inv * (lse*norm - cross)
    loss = inv * (lse * norm - cross)                              # (1, tk)
    sum_acc[...] += _lane_group_sum(loss)
    cnt_acc[...] += _lane_group_sum((loss != 0.0).astype(jnp.float32))

    @pl.when(j == pl.num_programs(1) - 1)
    def _():
        s3 = jnp.sum(sum_acc[...], axis=-1, keepdims=True).reshape(1, 1, 1)
        c3 = jnp.sum(cnt_acc[...], axis=-1, keepdims=True).reshape(1, 1, 1)
        lane = lax.broadcasted_iota(jnp.int32, (1, 1, 128), 2)
        out_ref[...] = jnp.where(lane == 0, s3, jnp.where(lane == 1, c3, 0.0))


def _aux_sem_kernel(logit_ref, lab_ref, out_ref, sum_acc, cnt_acc, *, num_classes):
    # logits: (1, C, TK)   labels: (1, 1, TK) i32   out: (1, 1, 128)
    k = pl.program_id(1)

    @pl.when(k == 0)
    def _():
        sum_acc[...] = jnp.zeros_like(sum_acc)
        cnt_acc[...] = jnp.zeros_like(cnt_acc)

    logits = logit_ref[0].astype(jnp.float32)                      # (C, TK)
    labels = lab_ref[0]                                            # (1, TK)
    m = jnp.max(logits, axis=0, keepdims=True)
    lse = m + jnp.log(jnp.sum(jnp.exp(logits - m), axis=0, keepdims=True))
    iota_c = lax.broadcasted_iota(jnp.int32, logits.shape, 0)
    picked = jnp.sum(jnp.where(iota_c == labels, logits, 0.0), axis=0, keepdims=True)
    keep = (labels != num_classes).astype(jnp.float32)             # ignore_index == num_classes
    loss = (lse - picked) * keep                                   # (1, TK)  (folded CE)
    sum_acc[...] += _lane_group_sum(loss)
    cnt_acc[...] += _lane_group_sum((loss != 0.0).astype(jnp.float32))

    @pl.when(k == pl.num_programs(1) - 1)
    def _():
        s3 = jnp.sum(sum_acc[...], axis=-1, keepdims=True).reshape(1, 1, 1)
        c3 = jnp.sum(cnt_acc[...], axis=-1, keepdims=True).reshape(1, 1, 1)
        lane = lax.broadcasted_iota(jnp.int32, (1, 1, 128), 2)
        out_ref[...] = jnp.where(lane == 0, s3, jnp.where(lane == 1, c3, 0.0))


# --------------------------------------------------------------------------------------
# loss wrappers (pallas_call setup + final mean in JAX)
# --------------------------------------------------------------------------------------
def focal_cross_entropy_loss(pred, gt, weight, focal_loss_alpha=0.75):
    out = pl.pallas_call(
        functools.partial(_focal_ce_kernel, alpha=float(focal_loss_alpha)),
        out_shape=jax.ShapeDtypeStruct((1, 128), jnp.float32),
    )(pred, gt.astype(jnp.int32), weight.astype(jnp.float32))
    return out[0, 0]


def mask_losses(src, tgt, void_mask, matched_cls_prob, masking_void_pixel=True):
    # fused softmax_ce_loss + dice_loss.  src/tgt: (B, N, L); void_mask: (B, L) bool.
    B, N, L = src.shape
    src_b = _pad_lanes(src.astype(jnp.bfloat16))
    tgt_b = _pad_lanes(tgt.astype(jnp.bfloat16))
    Lp = src_b.shape[-1]
    ce_void = _pad_lanes(void_mask.astype(jnp.float32), value=1.0)      # pads are void
    valid = _pad_lanes(jnp.ones((B, L), jnp.float32), value=0.0)
    dice_drop = ce_void if masking_void_pixel else (1.0 - valid)        # pads always dropped
    msk = jnp.stack([ce_void, dice_drop], axis=1).astype(jnp.bfloat16)  # (B, 2, Lp)
    cls3 = matched_cls_prob.astype(jnp.float32).reshape(B, N, 1)
    TL = _choose_tile(Lp, _mask_tile_target(N))
    nL = Lp // TL
    out = pl.pallas_call(
        _mask_loss_kernel,
        out_shape=jax.ShapeDtypeStruct((B, 1, 128), jnp.float32),
        grid=(B, nL),
        in_specs=[pl.BlockSpec((1, N, TL), lambda b, l: (b, 0, l)),
                  pl.BlockSpec((1, N, TL), lambda b, l: (b, 0, l)),
                  pl.BlockSpec((1, 2, TL), lambda b, l: (b, 0, l)),
                  pl.BlockSpec((1, N, 1), lambda b, l: (b, 0, 0))],
        out_specs=pl.BlockSpec((1, 1, 128), lambda b, l: (b, 0, 0)),
        scratch_shapes=[pltpu.VMEM((1, 128), jnp.float32),
                        pltpu.VMEM((1, 128), jnp.float32),
                        pltpu.VMEM((N, 128), jnp.float32),
                        pltpu.VMEM((N, 128), jnp.float32),
                        pltpu.VMEM((N, 128), jnp.float32)],
        compiler_params=_PARAMS_2D,
    )(src_b, tgt_b, msk, cls3)
    ce_sum, ce_cnt, dice = out[:, 0, 0], out[:, 0, 1], out[:, 0, 2]
    loss_mask = jnp.mean(divide_no_nan(ce_sum, jnp.maximum(ce_cnt, 1.0)))
    loss_dice = jnp.mean(dice)
    return loss_mask, loss_dice


def iou_scores(src_masks, pixel_gt_void_mask):
    """per-query sum(softmax(src)*void) / (sum(softmax(src)) + 1e-5) without an HBM softmax."""
    B, N = src_masks.shape[:2]
    src = src_masks.reshape(B, N, -1)
    L = src.shape[-1]
    src_b = _pad_lanes(src.astype(jnp.bfloat16))
    Lp = src_b.shape[-1]
    void = _pad_lanes(pixel_gt_void_mask.reshape(B, -1).astype(jnp.float32), value=0.0)
    valid = _pad_lanes(jnp.ones((B, L), jnp.float32), value=0.0)
    msk = jnp.stack([void * valid, valid], axis=1).astype(jnp.bfloat16)
    TL = _choose_tile(Lp, _mask_tile_target(N))
    nL = Lp // TL
    out = pl.pallas_call(
        _iou_kernel,
        out_shape=jax.ShapeDtypeStruct((B, N, 128), jnp.float32),
        grid=(B, nL),
        in_specs=[pl.BlockSpec((1, N, TL), lambda b, l: (b, 0, l)),
                  pl.BlockSpec((1, 2, TL), lambda b, l: (b, 0, l))],
        out_specs=pl.BlockSpec((1, N, 128), lambda b, l: (b, 0, 0)),
        scratch_shapes=[pltpu.VMEM((N, 128), jnp.float32),
                        pltpu.VMEM((N, 128), jnp.float32)],
        compiler_params=_PARAMS_2D,
    )(src_b, msk)
    return out[:, :, 0] / (out[:, :, 1] + 1e-05)


def pixelwise_insdis_loss(pixel_feature, gt_mask, sample_temperature, sample_k,
                          instance_discrimination_temperature, pixel_gt_void_mask,
                          inverse_gt_mask_area, key):
    B, C = pixel_feature.shape[:2]
    N = gt_mask.shape[1]
    pf = pixel_feature.reshape(B, C, -1)
    gm = gt_mask.reshape(B, N, -1)
    void = pixel_gt_void_mask.reshape(B, -1)
    inv = inverse_gt_mask_area.reshape(B, -1)
    sample_logits = jnp.log(inv) * sample_temperature
    sample_logits = sample_logits + void.astype(sample_logits.dtype) * _SOFTMAX_MASKING_CONSTANT
    idx = _gumbel_topk_sample(sample_logits, sample_k, key)                 # (B, K)
    K = sample_k
    gt_samp = jnp.take_along_axis(gm, jnp.broadcast_to(idx[:, None, :], (B, N, K)), axis=2)
    pr_samp = jnp.take_along_axis(pf, jnp.broadcast_to(idx[:, None, :], (B, C, K)), axis=2)
    # bf16 matmul operands; fold sqrt(1/T) into both pred operands (fuses into the gather)
    scale = (1.0 / float(instance_discrimination_temperature)) ** 0.5
    gt_samp = _pad_lanes(gt_samp.astype(jnp.bfloat16))
    pr_samp = _pad_lanes((pr_samp * scale).astype(jnp.bfloat16))
    Kp = gt_samp.shape[-1]
    TK = _choose_tile(Kp, _TK_TARGET)
    nK = Kp // TK
    out = pl.pallas_call(
        functools.partial(_insdis_kernel, tk=TK, k_valid=K),
        out_shape=jax.ShapeDtypeStruct((B, 1, 128), jnp.float32),
        grid=(B, nK),
        in_specs=[pl.BlockSpec((1, N, Kp), lambda b, j: (b, 0, 0)),    # resident across j
                  pl.BlockSpec((1, C, Kp), lambda b, j: (b, 0, 0))],   # resident across j
        out_specs=pl.BlockSpec((1, 1, 128), lambda b, j: (b, 0, 0)),
        scratch_shapes=[pltpu.VMEM((1, 128), jnp.float32),
                        pltpu.VMEM((1, 128), jnp.float32)],
        compiler_params=_PARAMS_2D,
    )(gt_samp, pr_samp)
    s, c = out[:, 0, 0], out[:, 0, 1]
    return jnp.mean(divide_no_nan(s, jnp.maximum(c, 1.0)))


def aux_semantic_loss(pred_semantic_logits, ground_truth_semantic, sample_temperature,
                      sample_k, pixel_gt_void_mask, inverse_gt_mask_area, num_classes, key):
    if pred_semantic_logits.shape[-2:] != ground_truth_semantic.shape[-2:]:
        # TODO(synk): assumes exact nested-grid alignment (matches the reference assertion).
        stride = (ground_truth_semantic.shape[-1] - 1) // (pred_semantic_logits.shape[-1] - 1)
        ground_truth_semantic = ground_truth_semantic[:, ::stride, ::stride]
        pixel_gt_void_mask = pixel_gt_void_mask[:, ::stride, ::stride]
        inverse_gt_mask_area = inverse_gt_mask_area[:, ::stride, ::stride]
    B, C = pred_semantic_logits.shape[:2]
    logits = pred_semantic_logits.reshape(B, C, -1)
    gt = ground_truth_semantic.reshape(B, -1).astype(jnp.int32)
    void = pixel_gt_void_mask.reshape(B, -1)
    inv = inverse_gt_mask_area.reshape(B, -1)
    if sample_k == 0:
        samp_gt, samp_logits = gt, logits
    else:
        sample_logits = jnp.log(inv) * sample_temperature
        sample_logits = sample_logits + void.astype(sample_logits.dtype) * _SOFTMAX_MASKING_CONSTANT
        idx = _gumbel_topk_sample(sample_logits, sample_k, key)
        K = sample_k
        samp_gt = jnp.take_along_axis(gt, idx, axis=1)
        samp_logits = jnp.take_along_axis(
            logits, jnp.broadcast_to(idx[:, None, :], (B, C, K)), axis=2)
    samp_logits = _pad_lanes(samp_logits)
    samp_gt = _pad_lanes(samp_gt, value=num_classes)      # pads get the ignore label
    Kp = samp_logits.shape[-1]
    gt3 = samp_gt.reshape(B, 1, Kp)
    TK = _choose_tile(Kp, _TL_TARGET)
    nK = Kp // TK
    out = pl.pallas_call(
        functools.partial(_aux_sem_kernel, num_classes=int(num_classes)),
        out_shape=jax.ShapeDtypeStruct((B, 1, 128), jnp.float32),
        grid=(B, nK),
        in_specs=[pl.BlockSpec((1, C, TK), lambda b, k: (b, 0, k)),
                  pl.BlockSpec((1, 1, TK), lambda b, k: (b, 0, k))],
        out_specs=pl.BlockSpec((1, 1, 128), lambda b, k: (b, 0, 0)),
        scratch_shapes=[pltpu.VMEM((1, 128), jnp.float32),
                        pltpu.VMEM((1, 128), jnp.float32)],
        compiler_params=_PARAMS_2D,
    )(samp_logits, gt3)
    s, c = out[:, 0, 0], out[:, 0, 1]
    return jnp.mean(divide_no_nan(s, jnp.maximum(c, 1.0)))


# --------------------------------------------------------------------------------------
# SetCriterion (JAX re-implementation)
# --------------------------------------------------------------------------------------
class SetCriterion:
    def __init__(self, num_classes, matcher, weight_dict, eos_coef, losses,
                 share_final_matching, pixel_insdis_temperature=1.5, pixel_insdis_sample_k=4096,
                 aux_semantic_temperature=2.0, aux_semantic_sample_k=4096,
                 masking_void_pixel=True):
        self.num_classes = num_classes
        self.matcher = matcher
        self.weight_dict = weight_dict
        self.eos_coef = eos_coef
        self.losses = losses
        self.share_final_matching = share_final_matching
        self.pixel_insdis_temperature = pixel_insdis_temperature
        self.pixel_insdis_sample_k = pixel_insdis_sample_k
        self.aux_semantic_temperature = aux_semantic_temperature
        self.aux_semantic_sample_k = aux_semantic_sample_k
        self.masking_void_pixel = masking_void_pixel

    # -------------------- individual losses --------------------
    def loss_labels(self, outputs, targets, key):
        return {'loss_ce': focal_cross_entropy_loss(
            outputs['pred_logits'], targets['labels'], targets['pq_loss_class_weight'])}

    def loss_masks(self, outputs, targets, key):
        src = outputs['pred_masks']
        B, N = src.shape[:2]
        src = src.reshape(B, N, -1)
        tgt = targets['masks'].reshape(B, N, -1)
        void = targets['pixel_gt_void_mask'].reshape(B, -1)
        lm, ld = mask_losses(src, tgt, void, targets['pq_loss_mask_weight'],
                             masking_void_pixel=self.masking_void_pixel)
        return {'loss_mask': lm, 'loss_dice': ld}

    def loss_pixels(self, outputs, targets, key):
        return {'loss_pixel_insdis': pixelwise_insdis_loss(
            pixel_feature=outputs['pixel_feature'], gt_mask=targets['masks'],
            sample_temperature=self.pixel_insdis_temperature,
            sample_k=self.pixel_insdis_sample_k,
            instance_discrimination_temperature=0.3,
            pixel_gt_void_mask=targets['pixel_gt_void_mask'],
            inverse_gt_mask_area=targets['inverse_gt_mask_area'], key=key)}

    def loss_semantic(self, outputs, targets, key):
        return {'loss_aux_semantic': aux_semantic_loss(
            pred_semantic_logits=outputs['aux_semantic_pred'],
            ground_truth_semantic=targets['ground_truth_semantic'],
            sample_temperature=self.aux_semantic_temperature,
            sample_k=self.aux_semantic_sample_k,
            pixel_gt_void_mask=targets['pixel_gt_void_mask'],
            inverse_gt_mask_area=targets['inverse_gt_mask_area'],
            num_classes=self.num_classes, key=key)}

    def get_loss(self, loss, outputs, targets, key):
        loss_map = {'labels': self.loss_labels, 'masks': self.loss_masks,
                    'pixels': self.loss_pixels, 'aux_semantic': self.loss_semantic}
        assert loss in loss_map, f'do you really want to compute {loss} loss?'
        return loss_map[loss](outputs, targets, key)

    # -------------------- ground-truth processing (no-grad glue) --------------------
    def process_gt(self, outputs, targets, indices, matched_dice, matched_cls_prob,
                   process_semantic=False):
        src_masks = outputs['pred_masks']
        B, N, H, W = src_masks.shape
        dtype = src_masks.dtype
        target_masks = jnp.zeros_like(src_masks)
        cls_prob = jnp.zeros((B, N), dtype=dtype)
        target_classes = jnp.full((B, N), self.num_classes, dtype=jnp.int32)
        for b, (src, tgt) in enumerate(indices):
            tm = targets[b]['masks'][tgt].astype(dtype)
            target_masks = target_masks.at[b, src].set(tm)
            cp = jnp.maximum(matched_cls_prob[b].astype(dtype), self.eos_coef)
            cls_prob = cls_prob.at[b, src].set(cp)
            target_classes = target_classes.at[b, src].set(
                targets[b]['labels'][tgt].astype(jnp.int32))
        target_masks = target_masks / jnp.maximum(
            jnp.sum(target_masks, axis=1, keepdims=True), 1.0)
        pixel_gt_void_mask = jnp.sum(target_masks, axis=1) < 1.0
        mask_gt_area = jnp.sum(target_masks, axis=(2, 3))
        pixel_gt_area = jnp.einsum('bnhw,bn->bhw', target_masks, mask_gt_area)
        inverse_gt_mask_area = (H * W) / jnp.maximum(pixel_gt_area, 1.0)
        # fused Pallas IoU: avoids materializing softmax(pred_masks) in HBM
        md = iou_scores(src_masks, pixel_gt_void_mask)
        for b, (src, tgt) in enumerate(indices):
            md = md.at[b, src].set(matched_dice[b].astype(md.dtype))
        md = jnp.maximum(md, self.eos_coef)
        processed_gt = {'masks': target_masks, 'labels': target_classes,
                        'pq_loss_mask_weight': cls_prob, 'pq_loss_class_weight': md,
                        'pixel_gt_void_mask': pixel_gt_void_mask,
                        'inverse_gt_mask_area': inverse_gt_mask_area}
        if process_semantic and 'semantic_masks' in targets[0]:
            gts = jnp.stack([t['semantic_masks'] for t in targets], axis=0)
            gts = jnp.where(gts == -1, self.num_classes, gts)
            processed_gt['ground_truth_semantic'] = gts
        return processed_gt

    # -------------------- forward --------------------
    def forward(self, outputs, targets, key):
        key_iter = iter(jax.random.split(key, 64))
        targets = [dict(t) for t in targets]
        outputs_without_aux = {k: v for k, v in outputs.items() if k != 'aux_outputs'}
        indices, matched_dice, matched_cls_prob = self.matcher(outputs_without_aux, targets)
        processed = self.process_gt(outputs, targets, indices, matched_dice,
                                    matched_cls_prob, process_semantic=True)
        losses = {}
        for loss in self.losses:
            losses.update(self.get_loss(loss, outputs, processed, next(key_iter)))
        if 'aux_outputs' in outputs:
            scales = [4, 1, 2, 2]
            for i, aux_outputs in enumerate(outputs['aux_outputs']):
                s = scales[i]
                for b in range(len(targets)):
                    m = targets[b]['masks'].astype(jnp.float32)
                    init = jnp.array(-jnp.inf, dtype=m.dtype)
                    pooled = lax.reduce_window(m, init, lax.max,
                                               (1, s, s), (1, s, s), 'VALID')
                    targets[b]['masks'] = pooled > 0.5
                indices, matched_dice, matched_cls_prob = self.matcher(aux_outputs, targets)
                processed = self.process_gt(aux_outputs, targets, indices,
                                            matched_dice, matched_cls_prob)
                for loss in self.losses:
                    if loss in ['aux_semantic']:
                        continue
                    l_dict = self.get_loss(loss, aux_outputs, processed, next(key_iter))
                    losses.update({k + f'_{i}': v for k, v in l_dict.items()})
        return losses

    __call__ = forward


class IdentityMatcher:
    # TODO(synk): Hungarian matcher is an externally injected module; replaced here by a
    # deterministic identity matcher (query i <-> target i) with fixed scores.
    def __call__(self, outputs, targets):
        indices, dices, probs = [], [], []
        for t in targets:
            nt = int(t['labels'].shape[0])
            src = jnp.arange(nt, dtype=jnp.int32)
            indices.append((src, src))
            dices.append(jnp.linspace(0.6, 0.9, nt, dtype=jnp.float32))
            probs.append(jnp.linspace(0.5, 0.95, nt, dtype=jnp.float32))
        return indices, dices, probs


# --------------------------------------------------------------------------------------
# demo
# --------------------------------------------------------------------------------------
if __name__ == "__main__":
    key = jax.random.PRNGKey(0)
    ks = jax.random.split(key, 16)
    B, Nq, num_classes = 2, 8, 5
    H = W = 16
    C_feat = 32
    num_tgt = 3

    outputs = {
        'pred_logits': jax.random.normal(ks[0], (B, Nq, num_classes + 1), jnp.float32),
        'pred_masks': jax.random.normal(ks[1], (B, Nq, H, W), jnp.float32),
        'pixel_feature': jax.random.normal(ks[2], (B, C_feat, H, W), jnp.float32),
        'aux_semantic_pred': jax.random.normal(ks[3], (B, num_classes, H, W), jnp.float32),
        'aux_outputs': [{
            'pred_logits': jax.random.normal(ks[4], (B, Nq, num_classes + 1), jnp.float32),
            'pred_masks': jax.random.normal(ks[5], (B, Nq, H // 4, W // 4), jnp.float32),
            'pixel_feature': jax.random.normal(ks[6], (B, C_feat, H // 4, W // 4), jnp.float32),
        }],
    }

    targets = []
    for b in range(B):
        labels = jax.random.randint(ks[7 + b], (num_tgt,), 0, num_classes)
        masks = (jax.random.uniform(ks[9 + b], (num_tgt, H, W)) > 0.55).astype(jnp.float32)
        sem = jax.random.randint(ks[11 + b], (H, W), -1, num_classes)
        targets.append({'masks': masks, 'labels': labels, 'semantic_masks': sem})

    criterion = SetCriterion(
        num_classes=num_classes, matcher=IdentityMatcher(), weight_dict={},
        eos_coef=0.1, losses=['labels', 'masks', 'pixels', 'aux_semantic'],
        share_final_matching=True,
        pixel_insdis_sample_k=16, aux_semantic_sample_k=64)

    losses = criterion(outputs, targets, jax.random.PRNGKey(42))
    losses = jax.block_until_ready(losses)
    for name, v in losses.items():
        assert bool(jnp.isfinite(v)), f"non-finite loss: {name}"
    print("KERNEL_OK")
</pallas_src>

<mosaic_0001>
module attributes {stable_mosaic.version = 11 : i64} {
  func.func @_iou_kernel(%arg0: i32, %arg1: i32, %arg2: memref<1x8x256xbf16, #tpu.memory_space<vmem>>, %arg3: memref<1x2x256xbf16, #tpu.memory_space<vmem>>, %arg4: memref<1x8x128xf32, #tpu.memory_space<vmem>>, %arg5: memref<8x128xf32, #tpu.memory_space<vmem>>, %arg6: memref<8x128xf32, #tpu.memory_space<vmem>>) attributes {dimension_semantics = [#tpu.dimension_semantics<parallel>, #tpu.dimension_semantics<arbitrary>], iteration_bounds = array<i64: 2, 1>, scalar_prefetch = 0 : i64, scratch_operands = 2 : i64, tpu.core_type = #tpu.core_type<tc>, window_params = [{transform_indices = @transform_0, window_bounds = array<i64: 1, 8, 256>}, {transform_indices = @transform_1, window_bounds = array<i64: 1, 2, 256>}, {transform_indices = @transform_2, window_bounds = array<i64: 1, 8, 128>}]} {
    %c0_i32 = arith.constant 0 : i32
    %0 = arith.cmpi eq, %arg1, %c0_i32 : i32
    %1 = arith.extui %0 : i1 to i32
    %c0_i32_0 = arith.constant 0 : i32
    %2 = arith.cmpi ne, %1, %c0_i32_0 : i32
    scf.if %2 {
      %cst_17 = arith.constant 0.000000e+00 : f32
      %40 = vector.broadcast %cst_17 : f32 to vector<8x128xf32>
      %c0_18 = arith.constant 0 : index
      %c0_19 = arith.constant 0 : index
      %41 = vector.load %arg5[%c0_18, %c0_19] : memref<8x128xf32, #tpu.memory_space<vmem>>, vector<8x128xf32>
      tpu.vector_store %arg5[%c0_18, %c0_19], %40 {strides = array<i32>} : memref<8x128xf32, #tpu.memory_space<vmem>>, vector<8x128xf32>,
      %cst_20 = arith.constant 0.000000e+00 : f32
      %42 = vector.broadcast %cst_20 : f32 to vector<8x128xf32>
      %c0_21 = arith.constant 0 : index
      %c0_22 = arith.constant 0 : index
      %43 = vector.load %arg6[%c0_21, %c0_22] : memref<8x128xf32, #tpu.memory_space<vmem>>, vector<8x128xf32>
      tpu.vector_store %arg6[%c0_21, %c0_22], %42 {strides = array<i32>} : memref<8x128xf32, #tpu.memory_space<vmem>>, vector<8x128xf32>,
    } else {
    }
    %c0 = arith.constant 0 : index
    %c0_1 = arith.constant 0 : index
    %c0_2 = arith.constant 0 : index
    %3 = vector.load %arg2[%c0, %c0_1, %c0_2] : memref<1x8x256xbf16, #tpu.memory_space<vmem>>, vector<1x8x256xbf16>
    %4 = vector.shape_cast %3 : vector<1x8x256xbf16> to vector<8x256xbf16>
    %5 = arith.extf %4 : vector<8x256xbf16> to vector<8x256xf32>
    %c0_3 = arith.constant 0 : index
    %c0_4 = arith.constant 0 : index
    %c0_5 = arith.constant 0 : index
    %6 = vector.load %arg3[%c0_3, %c0_4, %c0_5] : memref<1x2x256xbf16, #tpu.memory_space<vmem>>, vector<1x2x256xbf16>
    %7 = vector.shape_cast %6 : vector<1x2x256xbf16> to vector<2x256xbf16>
    %8 = arith.extf %7 : vector<2x256xbf16> to vector<2x256xf32>
    %9 = vector.extract_strided_slice %8 {offsets = [0, 0], sizes = [1, 256], strides = [1, 1]} : vector<2x256xf32> to vector<1x256xf32>
    %10 = vector.extract_strided_slice %8 {offsets = [1, 0], sizes = [1, 256], strides = [1, 1]} : vector<2x256xf32> to vector<1x256xf32>
    %cst = arith.constant dense<0xFF800000> : vector<256xf32>
    %11 = vector.multi_reduction <maximumf>, %5, %cst [0] : vector<8x256xf32> to vector<256xf32>
    %12 = vector.shape_cast %11 : vector<256xf32> to vector<1x256xf32>
    %13 = vector.broadcast %12 : vector<1x256xf32> to vector<8x256xf32>
    %14 = arith.subf %5, %13 : vector<8x256xf32>
    %15 = math.exp %14 : vector<8x256xf32>
    %cst_6 = arith.constant dense<0.000000e+00> : vector<256xf32>
    %16 = vector.multi_reduction <add>, %15, %cst_6 [0] : vector<8x256xf32> to vector<256xf32>
    %17 = vector.shape_cast %16 : vector<256xf32> to vector<1x256xf32>
    %18 = tpu.reciprocal %17 {approx = true} : vector<1x256xf32> -> vector<1x256xf32>
    %19 = vector.broadcast %18 : vector<1x256xf32> to vector<8x256xf32>
    %20 = arith.mulf %15, %19 : vector<8x256xf32>
    %c0_7 = arith.constant 0 : index
    %c0_8 = arith.constant 0 : index
    %21 = vector.load %arg5[%c0_7, %c0_8] : memref<8x128xf32, #tpu.memory_space<vmem>>, vector<8x128xf32>
    %22 = vector.broadcast %9 : vector<1x256xf32> to vector<8x256xf32>
    %23 = arith.mulf %20, %22 : vector<8x256xf32>
    %24 = vector.extract_strided_slice %23 {offsets = [0, 0], sizes = [8, 128], strides = [1, 1]} : vector<8x256xf32> to vector<8x128xf32>
    %25 = vector.extract_strided_slice %23 {offsets = [0, 128], sizes = [8, 128], strides = [1, 1]} : vector<8x256xf32> to vector<8x128xf32>
    %26 = arith.addf %24, %25 : vector<8x128xf32>
    %27 = arith.addf %21, %26 : vector<8x128xf32>
    %c0_9 = arith.constant 0 : index
    %c0_10 = arith.constant 0 : index
    %28 = vector.load %arg5[%c0_9, %c0_10] : memref<8x128xf32, #tpu.memory_space<vmem>>, vector<8x128xf32>
    tpu.vector_store %arg5[%c0_9, %c0_10], %27 {strides = array<i32>} : memref<8x128xf32, #tpu.memory_space<vmem>>, vector<8x128xf32>,
    %c0_11 = arith.constant 0 : index
    %c0_12 = arith.constant 0 : index
    %29 = vector.load %arg6[%c0_11, %c0_12] : memref<8x128xf32, #tpu.memory_space<vmem>>, vector<8x128xf32>
    %30 = vector.broadcast %10 : vector<1x256xf32> to vector<8x256xf32>
    %31 = arith.mulf %20, %30 : vector<8x256xf32>
    %32 = vector.extract_strided_slice %31 {offsets = [0, 0], sizes = [8, 128], strides = [1, 1]} : vector<8x256xf32> to vector<8x128xf32>
    %33 = vector.extract_strided_slice %31 {offsets = [0, 128], sizes = [8, 128], strides = [1, 1]} : vector<8x256xf32> to vector<8x128xf32>
    %34 = arith.addf %32, %33 : vector<8x128xf32>
    %35 = arith.addf %29, %34 : vector<8x128xf32>
    %c0_13 = arith.constant 0 : index
    %c0_14 = arith.constant 0 : index
    %36 = vector.load %arg6[%c0_13, %c0_14] : memref<8x128xf32, #tpu.memory_space<vmem>>, vector<8x128xf32>
    tpu.vector_store %arg6[%c0_13, %c0_14], %35 {strides = array<i32>} : memref<8x128xf32, #tpu.memory_space<vmem>>, vector<8x128xf32>,
    %c0_i32_15 = arith.constant 0 : i32
    %37 = arith.cmpi eq, %arg1, %c0_i32_15 : i32
    %38 = arith.extui %37 : i1 to i32
    %c0_i32_16 = arith.constant 0 : i32
    %39 = arith.cmpi ne, %38, %c0_i32_16 : i32
    scf.if %39 {
      %c0_17 = arith.constant 0 : index
      %c0_18 = arith.constant 0 : index
      %40 = vector.load %arg5[%c0_17, %c0_18] : memref<8x128xf32, #tpu.memory_space<vmem>>, vector<8x128xf32>
      %cst_19 = arith.constant dense<0.000000e+00> : vector<8xf32>
      %41 = vector.multi_reduction <add>, %40, %cst_19 [1] : vector<8x128xf32> to vector<8xf32>
      %42 = vector.shape_cast %41 : vector<8xf32> to vector<8x1xf32>
      %43 = vector.shape_cast %42 : vector<8x1xf32> to vector<1x8x1xf32>
      %c0_20 = arith.constant 0 : index
      %c0_21 = arith.constant 0 : index
      %44 = vector.load %arg6[%c0_20, %c0_21] : memref<8x128xf32, #tpu.memory_space<vmem>>, vector<8x128xf32>
      %cst_22 = arith.constant dense<0.000000e+00> : vector<8xf32>
      %45 = vector.multi_reduction <add>, %44, %cst_22 [1] : vector<8x128xf32> to vector<8xf32>
      %46 = vector.shape_cast %45 : vector<8xf32> to vector<8x1xf32>
      %47 = vector.shape_cast %46 : vector<8x1xf32> to vector<1x8x1xf32>
      %48 = tpu.iota {dimensions = array<i32: 2>} : vector<1x8x128xi32>
      %c0_i32_23 = arith.constant 0 : i32
      %49 = vector.broadcast %c0_i32_23 : i32 to vector<1x8x128xi32>
      %50 = arith.cmpi eq, %48, %49 : vector<1x8x128xi32>
      %c1_i32 = arith.constant 1 : i32
      %51 = vector.broadcast %c1_i32 : i32 to vector<1x8x128xi32>
      %52 = arith.cmpi eq, %48, %51 : vector<1x8x128xi32>
      %cst_24 = arith.constant 0.000000e+00 : f32
      %53 = vector.shape_cast %47 : vector<1x8x1xf32> to vector<1x8x1xf32>
      %54 = vector.broadcast %53 : vector<1x8x1xf32> to vector<1x8x128xf32>
      %55 = vector.broadcast %cst_24 : f32 to vector<1x8x128xf32>
      %56 = arith.select %52, %54, %55 : vector<1x8x128xi1>, vector<1x8x128xf32>
      %57 = vector.shape_cast %43 : vector<1x8x1xf32> to vector<1x8x1xf32>
      %58 = vector.broadcast %57 : vector<1x8x1xf32> to vector<1x8x128xf32>
      %59 = arith.select %50, %58, %56 : vector<1x8x128xi1>, vector<1x8x128xf32>
      %c0_25 = arith.constant 0 : index
      %c0_26 = arith.constant 0 : index
      %c0_27 = arith.constant 0 : index
      %60 = vector.load %arg4[%c0_25, %c0_26, %c0_27] : memref<1x8x128xf32, #tpu.memory_space<vmem>>, vector<1x8x128xf32>
      tpu.vector_store %arg4[%c0_25, %c0_26, %c0_27], %59 {strides = array<i32>} : memref<1x8x128xf32, #tpu.memory_space<vmem>>, vector<1x8x128xf32>,
    } else {
    }
    return
  }
  func.func @transform_0(%arg0: i32, %arg1: i32) -> (i32, i32, i32) {
    %c0_i32 = arith.constant 0 : i32
    %c0_i32_0 = arith.constant 0 : i32
    return %arg0, %c0_i32, %arg1 : i32, i32, i32
  }
  func.func @transform_1(%arg0: i32, %arg1: i32) -> (i32, i32, i32) {
    %c0_i32 = arith.constant 0 : i32
    %c0_i32_0 = arith.constant 0 : i32
    return %arg0, %c0_i32, %arg1 : i32, i32, i32
  }
  func.func @transform_2(%arg0: i32, %arg1: i32) -> (i32, i32, i32) {
    %c0_i32 = arith.constant 0 : i32
    %c0_i32_0 = arith.constant 0 : i32
    %c0_i32_1 = arith.constant 0 : i32
    return %arg0, %c0_i32, %c0_i32_0 : i32, i32, i32
  }
}

</mosaic_0001>

<llo_original>
// kernel: tpu_custom_call.1
$region0: #{tpu_custom_call.1}
  #allocation0 [shape = 'u32[]', space=smem, size = 0x4, offset = 0x4, fixed_abs, tag = 'smem constant byte address 0x4 - core index']
  #allocation1 [shape = 'u32[144,128]{1,0:T(1,128)}', space=vmem, size = 0x12000, scoped, tag = 'internal scratch']
  #allocation2 [shape = 'f32[8,128]{1,0:T(8,128)}', space=vmem, size = 0x1000, scoped, tag = 'scratch operand']
  #allocation3 [shape = 'f32[8,128]{1,0:T(8,128)}', space=vmem, size = 0x1000, scoped, tag = 'scratch operand']
  %s0 = inlined_call_operand.hbm [shape: bf16[2,8,256], index: 0, kind: input, shape index: {}]
  %s1 = inlined_call_operand.hbm [shape: bf16[2,2,256], index: 1, kind: input, shape index: {}]
  %s2 = inlined_call_operand.hbm [shape: f32[2,8,128], index: 2, kind: output, shape index: {}]
  %s3 = sld [smem:[#allocation0]]
  $region57: #{tpu_custom_call.1} parent=0
    _
  %s5 = ssub.s32 1, %s3
  %s6 = scalar_select 0, %s5, %s3
  $region1: #{tpu_custom_call.1} parent=0
    #allocation4 [shape = 'u8[8192]{0}', space=vmem, size = 0x2000, scoped, tag = 'input window, operand 0']
    #allocation5 [shape = 's32[2]{0}', space=sflag, size = 0x8, scoped, tag = 'scoped memory for tpu_custom_call.1']
    #allocation6 [shape = 's32[2]{0}', space=sflag, size = 0x8, scoped, tag = 'scoped memory for tpu_custom_call.1']
    #allocation7 [shape = 'u8[2048]{0}', space=vmem, size = 0x800, scoped, tag = 'input window, operand 1']
    #allocation8 [shape = 's32[2]{0}', space=sflag, size = 0x8, scoped, tag = 'scoped memory for tpu_custom_call.1']
    #allocation9 [shape = 'u8[8192]{0}', space=vmem, size = 0x2000, scoped, tag = 'output window, operand 0']
    %7 = vsyncpa [#allocation5], 0
    %s8 = scalar_lea.sflag [#allocation5], 1
    %9 = vsyncpa %s8, 0
    %10 = vsyncpa [#allocation8], 0
    %s11 = scalar_lea.sflag [#allocation8], 1
    %12 = vsyncpa %s11, 0
    %13 = vsyncpa [#allocation6], 0
    %s14 = scalar_lea.sflag [#allocation6], 1
    %15 = vsyncpa %s14, 0
    loop: start=0, step=1, limit=4
    $region2: #{tpu_custom_call.1} parent=1 // loop_pre_header
      _
    $region3: #{tpu_custom_call.1} parent=1 // loop_header
      %s17 = sphi 0, %s21
      %p18 = scmp.ge.s32.totalorder %s17, 4
      %s24 = sphi 0, %s36
      %s25 = sphi 0, %s32
      %s26 = sphi 0, %s24
      %s27 = sphi 0, %s25
      %s28 = sphi 0, %s26
      %s29 = sphi 0, %s27
      %s41 = sphi 0, %s43
      %s44 = sphi 0, %s41
      %s45 = sphi 0, %s44
      %s61 = sphi 0, %s45
      %s69 = sphi 0, %s71
      %s72 = sphi 0, %s69
      %s73 = sphi 0, %s72
      %s89 = sphi 0, %s73
      %s95 = sphi 0, %s97
      %s98 = sphi 0, %s95
      %s99 = sphi 0, %s98
      %s115 = sphi 0, %s99
    $region4: #{tpu_custom_call.1} parent=1 // loop_header_branch
      %20 = sbr.rel (%p18) target = $region8
    $region5: #{tpu_custom_call.1} parent=1 // loop_body
      %s22 = ssub.s32 %s17, 1
      %s23 = ssub.s32 %s17, 2
      %s30 = sadd.s32 1, %s25
      %p31 = scmp.ge.s32.totalorder %s30, 1
      %s32 = scalar_select %p31, 0, %s30
      %s33 = sadd.s32 1, %s24
      %s34 = scalar_select %p31, %s33, %s24
      %p35 = scmp.ge.s32.totalorder %s34, 2
      %s36 = scalar_select %p35, 0, %s34
      %s37 = ssub.s32 %s24, %s36
      %s38 = ssub.s32 %s25, %s32
      %s39 = sor.u32 %s37, %s38
      %p40 = scmp.eq.s32.totalorder %s39, 0
      %s42 = sadd.s32 %s41, 1
      %s43 = scalar_select %p40, %s41, %s42
      %p46 = pneg %p40
      %p47 = scmp.eq.s32.totalorder %s17, 1
      %p48 = por %p46, %p47
      %p49 = scmp.ne.s32.totalorder %s41, %s44
      %p50 = scmp.eq.s32.totalorder %s17, 0
      %p51 = por %p49, %p50
      %p52 = scmp.ne.s32.totalorder %s41, %s44
      %p53 = scmp.eq.s32.totalorder %s22, 1
      %p54 = por %p52, %p53
      %p55 = scmp.ne.s32.totalorder %s44, %s45
      %p56 = scmp.eq.s32.totalorder %s22, 0
      %p57 = por %p55, %p56
      %p58 = scmp.ne.s32.totalorder %s44, %s45
      %p59 = scmp.eq.s32.totalorder %s23, 1
      %p60 = por %p58, %p59
      %p62 = scmp.ne.s32.totalorder %s45, %s61
      %p63 = scmp.eq.s32.totalorder %s23, 0
      %p64 = por %p62, %p63
      %s65 = ssub.s32 %s24, %s36
      %s66 = ssub.s32 %s25, %s32
      %s67 = sor.u32 %s65, %s66
      %p68 = scmp.eq.s32.totalorder %s67, 0
      %s70 = sadd.s32 %s69, 1
      %s71 = scalar_select %p68, %s69, %s70
      %p74 = pneg %p68
      %p75 = scmp.eq.s32.totalorder %s17, 1
      %p76 = por %p74, %p75
      %p77 = scmp.ne.s32.totalorder %s69, %s72
      %p78 = scmp.eq.s32.totalorder %s17, 0
      %p79 = por %p77, %p78
      %p80 = scmp.ne.s32.totalorder %s69, %s72
      %p81 = scmp.eq.s32.totalorder %s22, 1
      %p82 = por %p80, %p81
      %p83 = scmp.ne.s32.totalorder %s72, %s73
      %p84 = scmp.eq.s32.totalorder %s22, 0
      %p85 = por %p83, %p84
      %p86 = scmp.ne.s32.totalorder %s72, %s73
      %p87 = scmp.eq.s32.totalorder %s23, 1
      %p88 = por %p86, %p87
      %p90 = scmp.ne.s32.totalorder %s73, %s89
      %p91 = scmp.eq.s32.totalorder %s23, 0
      %p92 = por %p90, %p91
      %s93 = ssub.s32 %s24, %s36
      %p94 = scmp.eq.s32.totalorder %s93, 0
      %s96 = sadd.s32 %s95, 1
      %s97 = scalar_select %p94, %s95, %s96
      %p100 = pneg %p94
      %p101 = scmp.eq.s32.totalorder %s17, 1
      %p102 = por %p100, %p101
      %p103 = scmp.ne.s32.totalorder %s95, %s98
      %p104 = scmp.eq.s32.totalorder %s17, 0
      %p105 = por %p103, %p104
      %p106 = scmp.ne.s32.totalorder %s95, %s98
      %p107 = scmp.eq.s32.totalorder %s22, 1
      %p108 = por %p106, %p107
      %p109 = scmp.ne.s32.totalorder %s98, %s99
      %p110 = scmp.eq.s32.totalorder %s22, 0
      %p111 = por %p109, %p110
      %p112 = scmp.ne.s32.totalorder %s98, %s99
      %p113 = scmp.eq.s32.totalorder %s23, 1
      %p114 = por %p112, %p113
      %p116 = scmp.ne.s32.totalorder %s99, %s115
      %p117 = scmp.eq.s32.totalorder %s23, 0
      %p118 = por %p116, %p117
      %p119 = scmp.le.s32.totalorder 1, %s17
      %p120 = scmp.lt.s32.totalorder %s17, 3
      %p121 = pnand %p119, %p120
      %p122 = pneg %p121
      // Predicated region
      $region9: #{tpu_custom_call.1} parent=5 // pred_check
        _
      $region10: #{tpu_custom_call.1} parent=5 // pred_check_branch
        %124 = sbr.rel (%p121) target = $region12
      $region11: #{tpu_custom_call.1} parent=5 // pred_region
        %s125 = ssub.s32 %s17, 1
      $region12: #{tpu_custom_call.1} parent=5 // pred_fallthru
        _
      %p126 = scmp.lt.s32.totalorder %s17, 2
      // Predicated region
      $region13: #{tpu_custom_call.1} parent=5 // pred_check
        %p127 = pneg %p126
      $region14: #{tpu_custom_call.1} parent=5 // pred_check_branch
        %129 = sbr.rel (%p127) target = $region16
      $region15: #{tpu_custom_call.1} parent=5 // pred_region
        // Predicated region
        $region17: #{tpu_custom_call.1} parent=15 // pred_check
          %p130 = pneg %p51
        $region18: #{tpu_custom_call.1} parent=15 // pred_check_branch
          %132 = sbr.rel (%p130) target = $region20
        $region19: #{tpu_custom_call.1} parent=15 // pred_region
          %s133 = sand.u32 %s41, 1
          %s134 = scalar_lea.sflag [#allocation5], %s133
          %s135 = sand.u32 %s41, 1
          %s136 = smul.addr %s135, 8
          %s137 = scalar_lea.vmem [#allocation4], %s136
          %s138 = smul.u32 2, %s25
          %s140 = ssub.s32 128, 128
          %141 = vsyncadd %s134, %s140
          %s142 = smul.addr %s24, 2
          %s143 = sadd.s32 %s138, %s142
          %s144 = smul.addr %s143, 64
          %s145 = scalar_lea.hbm %s0, %s144
          %s147 = sshll.u32 %s137, 4
          %s148 = int_to_ptr.vmem [resolvable:$true] %s147
          %150 = dma.hbm_to_vmem [thread:$0]  %s145, 128, %s148, %s134
        $region20: #{tpu_custom_call.1} parent=15 // pred_fallthru
          _
        // Predicated region
        $region21: #{tpu_custom_call.1} parent=15 // pred_check
          %p151 = pneg %p79
        $region22: #{tpu_custom_call.1} parent=15 // pred_check_branch
          %153 = sbr.rel (%p151) target = $region24
        $region23: #{tpu_custom_call.1} parent=15 // pred_region
          %s154 = sand.u32 %s69, 1
          %s155 = scalar_lea.sflag [#allocation8], %s154
          %s156 = sand.u32 %s69, 1
          %s157 = smul.addr %s156, 2
          %s158 = scalar_lea.vmem [#allocation7], %s157
          %s159 = smul.u32 2, %s25
          %s161 = ssub.s32 32, 32
          %162 = vsyncadd %s155, %s161
          %s163 = smul.addr %s24, 2
          %s164 = sadd.s32 %s159, %s163
          %s165 = smul.addr %s164, 16
          %s166 = scalar_lea.hbm %s1, %s165
          %s168 = sshll.u32 %s158, 4
          %s169 = int_to_ptr.vmem [resolvable:$true] %s168
          %171 = dma.hbm_to_vmem [thread:$0]  %s166, 32, %s169, %s155
        $region24: #{tpu_custom_call.1} parent=15 // pred_fallthru
          _
      $region16: #{tpu_custom_call.1} parent=5 // pred_fallthru
        _
      %p172 = scmp.le.s32.totalorder 1, %s17
      %p173 = scmp.lt.s32.totalorder %s17, 3
      %p174 = pnand %p172, %p173
      %p175 = pneg %p174
      // Predicated region
      $region25: #{tpu_custom_call.1} parent=5 // pred_check
        _
      $region26: #{tpu_custom_call.1} parent=5 // pred_check_branch
        %177 = sbr.rel (%p174) target = $region28
      $region27: #{tpu_custom_call.1} parent=5 // pred_region
        %s178 = ssub.s32 %s17, 1
        %s179 = sand.u32 %s44, 1
        %s180 = scalar_lea.sflag [#allocation5], %s179
        %s181 = sand.u32 %s44, 1
        %s182 = smul.addr %s181, 8
        %s183 = scalar_lea.vmem [#allocation4], %s182
        // Predicated region
        $region29: #{tpu_custom_call.1} parent=27 // pred_check
          %p184 = pneg %p57
        $region30: #{tpu_custom_call.1} parent=27 // pred_check_branch
          %186 = sbr.rel (%p184) target = $region32
        $region31: #{tpu_custom_call.1} parent=27 // pred_region
          %187 = dma.done %s180, 128
        $region32: #{tpu_custom_call.1} parent=27 // pred_fallthru
          _
        %s188 = sand.u32 %s72, 1
        %s189 = scalar_lea.sflag [#allocation8], %s188
        %s190 = sand.u32 %s72, 1
        %s191 = smul.addr %s190, 2
        %s192 = scalar_lea.vmem [#allocation7], %s191
        // Predicated region
        $region33: #{tpu_custom_call.1} parent=27 // pred_check
          %p193 = pneg %p85
        $region34: #{tpu_custom_call.1} parent=27 // pred_check_branch
          %195 = sbr.rel (%p193) target = $region36
        $region35: #{tpu_custom_call.1} parent=27 // pred_region
          %196 = dma.done %s189, 32
        $region36: #{tpu_custom_call.1} parent=27 // pred_fallthru
          _
        %s197 = sand.u32 %s44, 1
        %s198 = scalar_lea.sflag [#allocation5], %s197
        %s199 = sand.u32 %s44, 1
        %s200 = smul.addr %s199, 8
        %s201 = scalar_lea.vmem [#allocation4], %s200
        %p202 = pneg %p57
        %p203 = pneg %p54
        %s204 = sand.u32 %s72, 1
        %s205 = scalar_lea.sflag [#allocation8], %s204
        %s206 = sand.u32 %s72, 1
        %s207 = smul.addr %s206, 2
        %s208 = scalar_lea.vmem [#allocation7], %s207
        %p209 = pneg %p85
        %p210 = pneg %p82
        %p211 = pneg %p111
        %p212 = pneg %p108
        %s213 = sand.u32 %s98, 1
        %s214 = scalar_lea.sflag [#allocation6], %s213
        %s215 = sand.u32 %s98, 1
        %s216 = smul.addr %s215, 8
        %s217 = scalar_lea.vmem [#allocation9], %s216
        %s218 = smul.u32 2, %s27
        %s219 = smul.u32 2, %s27
        %p220 = scmp.eq.s32.totalorder %s27, 0
        // Predicated region
        $region37: #{tpu_custom_call.1} parent=27 // pred_check
          %p221 = pneg %p220
        $region38: #{tpu_custom_call.1} parent=27 // pred_check_branch
          %223 = sbr.rel (%p221) target = $region40
        $region39: #{tpu_custom_call.1} parent=27 // pred_region
          %224 = vst [vmem:[#allocation2] sm:$0xff] 0.0
          %225 = vst [vmem:[#allocation3] sm:$0xff] 0.0
        $region40: #{tpu_custom_call.1} parent=27 // pred_fallthru
          _
        %v226 = vld [vmem:[%s183] sm:$0xff]
        %v227 = vunpack.c.l.bf16 %v226
        %v228 = vunpack.c.h.bf16 %v226
        %v229 = vld [vmem:[%s192] sm:$0x3]
        %v230 = vunpack.c.l.bf16 %v229
        %v231 = vrot.slane %v227, 4
        %v232 = vmax.f32 %v227, %v231
        %v233 = vrot.slane %v232, 2
        %v234 = vmax.f32 %v232, %v233
        %v235 = vrot.slane %v234, 1
        %v236 = vmax.f32 %v234, %v235
        %v237 = vrot.slane %v228, 4
        %v238 = vmax.f32 %v228, %v237
        %v239 = vrot.slane %v238, 2
        %v240 = vmax.f32 %v238, %v239
        %v241 = vrot.slane %v240, 1
        %v242 = vmax.f32 %v240, %v241
        %v243 = vsub.f32 %v227, %v236
        %v244 = vsub.f32 %v228, %v242
        %v245 = vmul.f32 %v243, 1.442695
        %v246 = vpow.pop %v245
        %v247 = vmul.f32 %v244, 1.442695
        %v248 = vpow.pop %v247
        %v249 = vrot.slane %v246, 4
        %v250 = vadd.f32 %v246, %v249
        %v251 = vrot.slane %v250, 2
        %v252 = vadd.f32 %v250, %v251
        %v253 = vrot.slane %v252, 1
        %v254 = vadd.f32 %v252, %v253
        %v255 = vrot.slane %v248, 4
        %v256 = vadd.f32 %v248, %v255
        %v257 = vrot.slane %v256, 2
        %v258 = vadd.f32 %v256, %v257
        %v259 = vrot.slane %v258, 1
        %v260 = vadd.f32 %v258, %v259
        %v261 = vrcp.pop %v254
        %v262 = vrcp.pop %v260
        %v263 = vmul.f32 %v246, %v261
        %v264 = vmul.f32 %v248, %v262
        %v265 = vld [vmem:[#allocation2] sm:$0xff]
        %v267 = vlaneseq
        %v268 = vshrl.u32 %v267, 7
        %v269 = vsub.s32 0, %v268
        %v270 = vrot.slane %v230, %v269
        %v271 = vlaneseq
        %v272 = vshrl.u32 %v271, 7
        %v273 = vsub.s32 2, %v272
        %v274 = vrot.slane %v230, %v273
        %v277 = vlaneseq
        %v278 = vshrl.u32 %v277, 7
        %v279 = vsub.s32 0, %v278
        %v280 = vrot.slane %v270, %v279
        %v281 = vlaneseq
        %v282 = vshrl.u32 %v281, 7
        %v283 = vsub.s32 0, %v282
        %v284 = vrot.slane %v274, %v283
        %v285 = vmul.f32 %v263, %v280
        %v286 = vmul.f32 %v264, %v284
        %v287 = vadd.f32 %v285, %v286
        %v288 = vadd.f32 %v265, %v287
        %289 = vst [vmem:[#allocation2] sm:$0xff] %v288
        %v290 = vld [vmem:[#allocation3] sm:$0xff]
        %v291 = vlaneseq
        %v292 = vshrl.u32 %v291, 7
        %v293 = vsub.s32 1, %v292
        %v294 = vrot.slane %v230, %v293
        %v295 = vlaneseq
        %v296 = vshrl.u32 %v295, 7
        %v297 = vsub.s32 3, %v296
        %v298 = vrot.slane %v230, %v297
        %v301 = vlaneseq
        %v302 = vshrl.u32 %v301, 7
        %v303 = vsub.s32 1, %v302
        %v304 = vrot.slane %v294, %v303
        %v305 = vlaneseq
        %v306 = vshrl.u32 %v305, 7
        %v307 = vsub.s32 1, %v306
        %v308 = vrot.slane %v298, %v307
        %v309 = vmul.f32 %v263, %v304
        %v310 = vmul.f32 %v264, %v308
        %v311 = vadd.f32 %v309, %v310
        %v312 = vadd.f32 %v290, %v311
        %313 = vst [vmem:[#allocation3] sm:$0xff] %v312
        // Predicated region
        $region41: #{tpu_custom_call.1} parent=27 // pred_check
          %p314 = pneg %p220
        $region42: #{tpu_custom_call.1} parent=27 // pred_check_branch
          %316 = sbr.rel (%p314) target = $region44
        $region43: #{tpu_custom_call.1} parent=27 // pred_region
          %v317 = vld [vmem:[#allocation2] sm:$0xff]
          %318 = vadd.xlane.f32.xlu0 %v317
          %v319 = vpop.xlane.xlu0 %318
          %v320 = vld [vmem:[#allocation3] sm:$0xff]
          %321 = vadd.xlane.f32.xlu0 %v320
          %v322 = vpop.xlane.xlu0 %321
          %v323 = vlaneseq
          %v324 = vand.u32 %v323, 127
          %vm325 = vcmp.eq.s32.totalorder %v324, 0
          %vm326 = vcmp.eq.s32.totalorder %v324, 1
          %v327 = vsel %vm326, %v322, 0.0
          %v328 = vsel %vm325, %v319, %v327
          %329 = vst [vmem:[%s217] sm:$0xff] %v328
        $region44: #{tpu_custom_call.1} parent=27 // pred_fallthru
          _
        %s330 = sand.u32 %s98, 1
        %s331 = scalar_lea.sflag [#allocation6], %s330
        %s332 = sand.u32 %s98, 1
        %s333 = smul.addr %s332, 8
        %s334 = scalar_lea.vmem [#allocation9], %s333
        // Predicated region
        $region45: #{tpu_custom_call.1} parent=27 // pred_check
          %p335 = pneg %p108
        $region46: #{tpu_custom_call.1} parent=27 // pred_check_branch
          %337 = sbr.rel (%p335) target = $region48
        $region47: #{tpu_custom_call.1} parent=27 // pred_region
          %s339 = ssub.s32 128, 128
          %340 = vsyncadd %s331, %s339
          %s341 = smul.addr %s26, 128
          %s342 = scalar_lea.hbm %s2, %s341
          %s344 = sshll.u32 %s334, 4
          %s345 = int_to_ptr.vmem [resolvable:$true] %s344
          %347 = dma.vmem_to_hbm [thread:$0]  %s345, 128, %s342, %s331
        $region48: #{tpu_custom_call.1} parent=27 // pred_fallthru
          _
      $region28: #{tpu_custom_call.1} parent=5 // pred_fallthru
        _
      %p348 = scmp.le.s32.totalorder 2, %s17
      // Predicated region
      $region49: #{tpu_custom_call.1} parent=5 // pred_check
        %p349 = pneg %p348
      $region50: #{tpu_custom_call.1} parent=5 // pred_check_branch
        %351 = sbr.rel (%p349) target = $region52
      $region51: #{tpu_custom_call.1} parent=5 // pred_region
        %s352 = ssub.s32 %s17, 2
        // Predicated region
        $region53: #{tpu_custom_call.1} parent=51 // pred_check
          %p353 = pneg %p114
        $region54: #{tpu_custom_call.1} parent=51 // pred_check_branch
          %355 = sbr.rel (%p353) target = $region56
        $region55: #{tpu_custom_call.1} parent=51 // pred_region
          %s356 = sand.u32 %s99, 1
          %s357 = scalar_lea.sflag [#allocation6], %s356
          %s358 = sand.u32 %s99, 1
          %s359 = smul.addr %s358, 8
          %s360 = scalar_lea.vmem [#allocation9], %s359
          %361 = dma.done %s357, 128
        $region56: #{tpu_custom_call.1} parent=51 // pred_fallthru
          _
      $region52: #{tpu_custom_call.1} parent=5 // pred_fallthru
        _
    $region6: #{tpu_custom_call.1} parent=1 // loop_footer
      %s21 = sadd.s32 1, %s17
    $region7: #{tpu_custom_call.1} parent=1 // loop_footer_branch
      %16 = sbr.rel target = $region3
    $region8: #{tpu_custom_call.1} parent=1 // loop_exit
      _
    %362 = vsyncpa [#allocation5], 1
    %s363 = scalar_lea.sflag [#allocation5], 1
    %364 = vsyncpa %s363, 1
    %365 = vsyncpa [#allocation8], 1
    %s366 = scalar_lea.sflag [#allocation8], 1
    %367 = vsyncpa %s366, 1
    %368 = vsyncpa [#allocation6], 1
    %s369 = scalar_lea.sflag [#allocation6], 1
    %370 = vsyncpa %s369, 1

</llo_original>
